<compile_context>
chip_gen: v6e
topology: v6e:2x2x1
jax: 0.10.0
libtpu: 0.0.40
codegen_flags: <defaults>
</compile_context>

<pallas_src>
import jax
import jax.numpy as jnp
from jax.experimental import pallas as pl
from jax.experimental.pallas import tpu as pltpu


# ----------------------------------------------------------------------------
# Kernels
# ----------------------------------------------------------------------------
def _gate_zr_kernel(
    x_ref, h_full_ref, h_tile_ref,
    wzx_ref, wzh_ref, wrx_ref, wrh_ref,
    bz_ref, br_ref,
    z_ref, rh_ref,
):
    """Per N-tile: z = sigmoid(x@Wzx + h@Wzh + bz), rh = sigmoid(...)*h."""
    x = x_ref[...].astype(jnp.bfloat16)        # (B, H) resident, DMA'd once
    h = h_full_ref[...].astype(jnp.bfloat16)   # (B, H) resident, DMA'd once

    z = jnp.dot(x, wzx_ref[...], preferred_element_type=jnp.float32)
    z = z + jnp.dot(h, wzh_ref[...], preferred_element_type=jnp.float32)
    z = jax.nn.sigmoid(z + bz_ref[...])        # f32 elementwise

    r = jnp.dot(x, wrx_ref[...], preferred_element_type=jnp.float32)
    r = r + jnp.dot(h, wrh_ref[...], preferred_element_type=jnp.float32)
    r = jax.nn.sigmoid(r + br_ref[...])

    z_ref[...] = z.astype(z_ref.dtype)
    rh_ref[...] = (r * h_tile_ref[...].astype(jnp.float32)).astype(rh_ref.dtype)


def _gate_out_kernel(rh_full_ref, z_ref, h_tile_ref, whh_ref, bhh_ref, o_ref):
    """Per N-tile: out = (1-z)*h + z*tanh((r*h) @ Whh + bhh)."""
    rh = rh_full_ref[...].astype(jnp.bfloat16)  # (B, H) resident (matmul K operand)
    pre = jnp.dot(rh, whh_ref[...], preferred_element_type=jnp.float32) + bhh_ref[...]
    h_hat = jnp.tanh(pre)
    z = z_ref[...].astype(jnp.float32)
    h = h_tile_ref[...].astype(jnp.float32)
    o_ref[...] = ((1.0 - z) * h + z * h_hat).astype(o_ref.dtype)


def _gate_no_h_kernel(x_ref, whx_ref, bhx_ref, o_ref):
    """h is None path: out = tanh(x @ Whx + bhx), tiled over N."""
    x = x_ref[...].astype(jnp.bfloat16)
    pre = jnp.dot(x, whx_ref[...], preferred_element_type=jnp.float32) + bhx_ref[...]
    o_ref[...] = jnp.tanh(pre).astype(o_ref.dtype)


# ----------------------------------------------------------------------------
# Tiling / parameter preparation
# ----------------------------------------------------------------------------
def _pick_tile_n(hidden, n_streamed_weights, weight_bytes=2,
                 vmem_budget=24 * 1024 * 1024):
    """Largest 128-multiple tile whose double-buffered weight tiles fit VMEM.

    Budget of 24 MiB keeps us under the 32 MiB scoped-VMEM default on
    v6e/v7x (v7x has only 64 MiB physical VMEM per TC).
    """
    for tn in (512, 256, 128):
        if hidden % tn == 0:
            if 2 * n_streamed_weights * hidden * tn * weight_bytes <= vmem_budget:
                return tn
    if hidden % 128 == 0:
        return 128
    return hidden  # small / irregular hidden: single full-width block


def init_gate_cell_params(key, hidden_size, dtype=jnp.float32):
    """PyTorch nn.Linear-style init; weights stored transposed as (in, out)."""
    names = ["z_x", "z_h", "r_x", "r_h", "h_x", "h_h"]
    params = {}
    bound = 1.0 / (hidden_size ** 0.5)
    keys = jax.random.split(key, 2 * len(names))
    for i, n in enumerate(names):
        kw, kb = keys[2 * i], keys[2 * i + 1]
        w = jax.random.uniform(kw, (hidden_size, hidden_size), dtype, -bound, bound)
        b = jax.random.uniform(kb, (1, hidden_size), dtype, -bound, bound)
        params[n + "_w"] = w
        params[n + "_b"] = b
    return params


def prepare_gate_cell_weights(params, weight_dtype=jnp.bfloat16):
    """One-time host-side prep: bf16 weight streams + pre-added gate biases."""
    wd = weight_dtype
    return dict(
        wzx=params["z_x_w"].astype(wd), wzh=params["z_h_w"].astype(wd),
        wrx=params["r_x_w"].astype(wd), wrh=params["r_h_w"].astype(wd),
        whh=params["h_h_w"].astype(wd), whx=params["h_x_w"].astype(wd),
        bz=(params["z_x_b"] + params["z_h_b"]).astype(jnp.float32),
        br=(params["r_x_b"] + params["r_h_b"]).astype(jnp.float32),
        bhh=params["h_h_b"].astype(jnp.float32),
        bhx=params["h_x_b"].astype(jnp.float32),
    )


# ----------------------------------------------------------------------------
# Forward wrapper
# ----------------------------------------------------------------------------
def gate_cell_forward(w, x, h=None, tile_n=None):
    batch, hidden = x.shape
    out_dtype = x.dtype

    def full(shape):          # resident block (constant index => DMA'd once)
        return pl.BlockSpec(shape, lambda j: (0, 0))

    def tiled(rows, tn):      # streamed per-N-tile block
        return pl.BlockSpec((rows, tn), lambda j: (0, j))

    cparams = pltpu.CompilerParams(dimension_semantics=("parallel",))

    if h is None:
        tn = tile_n or _pick_tile_n(hidden, n_streamed_weights=1)
        return pl.pallas_call(
            _gate_no_h_kernel,
            out_shape=jax.ShapeDtypeStruct((batch, hidden), out_dtype),
            grid=(hidden // tn,),
            in_specs=[full((batch, hidden)),  # x (resident)
                      tiled(hidden, tn),      # Whx tile
                      tiled(1, tn)],          # bhx tile
            out_specs=tiled(batch, tn),
            compiler_params=cparams,
        )(x, w["whx"], w["bhx"])

    # ---- stage 1: z and r*h, tiled over the output hidden dim --------------
    tn1 = tile_n or _pick_tile_n(hidden, n_streamed_weights=4)
    z, rh = pl.pallas_call(
        _gate_zr_kernel,
        out_shape=(jax.ShapeDtypeStruct((batch, hidden), jnp.float32),
                   jax.ShapeDtypeStruct((batch, hidden), jnp.float32)),
        grid=(hidden // tn1,),
        in_specs=[
            full((batch, hidden)),  # x (resident; matmul K operand)
            full((batch, hidden)),  # h (resident; matmul K operand)
            tiled(batch, tn1),      # h tile (for r*h)
            tiled(hidden, tn1),     # Wzx
            tiled(hidden, tn1),     # Wzh
            tiled(hidden, tn1),     # Wrx
            tiled(hidden, tn1),     # Wrh
            tiled(1, tn1),          # bz = bzx + bzh
            tiled(1, tn1),          # br = brx + brh
        ],
        out_specs=(tiled(batch, tn1), tiled(batch, tn1)),
        compiler_params=cparams,
    )(x, h, h, w["wzx"], w["wzh"], w["wrx"], w["wrh"], w["bz"], w["br"])

    # ---- stage 2: out = (1-z)*h + z*tanh((r*h) @ Whh + bhh) -----------------
    tn2 = tile_n or _pick_tile_n(hidden, n_streamed_weights=1)
    out = pl.pallas_call(
        _gate_out_kernel,
        out_shape=jax.ShapeDtypeStruct((batch, hidden), out_dtype),
        grid=(hidden // tn2,),
        in_specs=[
            full((batch, hidden)),  # r*h (resident; matmul K operand)
            tiled(batch, tn2),      # z tile
            tiled(batch, tn2),      # h tile
            tiled(hidden, tn2),     # Whh tile
            tiled(1, tn2),          # bhh tile
        ],
        out_specs=tiled(batch, tn2),
        compiler_params=cparams,
    )(rh, z, h, w["whh"], w["bhh"])
    return out


# ----------------------------------------------------------------------------
# Pure-JAX f32 reference (master weights)
# ----------------------------------------------------------------------------
def gate_cell_reference(params, x, h=None):
    lin = lambda n, v: v @ params[n + "_w"] + params[n + "_b"]
    z = lin("z_x", x)
    r = lin("r_x", x)
    if h is not None:
        z = z + lin("z_h", h)
        r = r + lin("r_h", h)
    z = jax.nn.sigmoid(z)
    r = jax.nn.sigmoid(r)
    h_hat = lin("h_x", x)
    if h is not None:
        h_hat = lin("h_h", r * h)
    h_hat = jnp.tanh(h_hat)
    return h_hat if h is None else (1.0 - z) * h + z * h_hat


if __name__ == "__main__":
    batch, hidden = 8, 256

    key = jax.random.PRNGKey(0)
    kp, kx, kh = jax.random.split(key, 3)
    params = init_gate_cell_params(kp, hidden)
    weights = prepare_gate_cell_weights(params)     # bf16 streams, fused biases
    x = jax.random.normal(kx, (batch, hidden), jnp.float32)
    h = jax.random.normal(kh, (batch, hidden), jnp.float32)

    # h-provided (GRU-like) path; tile_n=128 -> 2 grid steps to exercise the
    # pipelined / parallel N-tiling.
    out = jax.block_until_ready(gate_cell_forward(weights, x, h, tile_n=128))
    ref = gate_cell_reference(params, x, h)
    assert out.shape == (batch, hidden)
    assert bool(jnp.all(jnp.isfinite(out)))
    err = float(jnp.max(jnp.abs(out - ref)))
    assert jnp.allclose(out, ref, atol=2.5e-2), f"max abs err {err}"

    # h = None path.
    out0 = jax.block_until_ready(gate_cell_forward(weights, x, None, tile_n=128))
    ref0 = gate_cell_reference(params, x, None)
    err0 = float(jnp.max(jnp.abs(out0 - ref0)))
    assert jnp.allclose(out0, ref0, atol=2.5e-2), f"max abs err {err0}"

    print("KERNEL_OK")
</pallas_src>

<mosaic_0001>
module attributes {stable_mosaic.version = 11 : i64} {
  func.func @_gate_zr_kernel(%arg0: i32, %arg1: memref<8x256xf32, #tpu.memory_space<vmem>>, %arg2: memref<8x256xf32, #tpu.memory_space<vmem>>, %arg3: memref<8x128xf32, #tpu.memory_space<vmem>>, %arg4: memref<256x128xbf16, #tpu.memory_space<vmem>>, %arg5: memref<256x128xbf16, #tpu.memory_space<vmem>>, %arg6: memref<256x128xbf16, #tpu.memory_space<vmem>>, %arg7: memref<256x128xbf16, #tpu.memory_space<vmem>>, %arg8: memref<1x128xf32, #tpu.memory_space<vmem>>, %arg9: memref<1x128xf32, #tpu.memory_space<vmem>>, %arg10: memref<8x128xf32, #tpu.memory_space<vmem>>, %arg11: memref<8x128xf32, #tpu.memory_space<vmem>>) attributes {dimension_semantics = [#tpu.dimension_semantics<parallel>], iteration_bounds = array<i64: 2>, scalar_prefetch = 0 : i64, scratch_operands = 0 : i64, tpu.core_type = #tpu.core_type<tc>, window_params = [{pipeline_mode = #tpu.pipeline_mode<synchronous>, transform_indices = @transform_0, window_bounds = array<i64: 8, 256>}, {pipeline_mode = #tpu.pipeline_mode<synchronous>, transform_indices = @transform_1, window_bounds = array<i64: 8, 256>}, {transform_indices = @transform_2, window_bounds = array<i64: 8, 128>}, {transform_indices = @transform_3, window_bounds = array<i64: 256, 128>}, {transform_indices = @transform_4, window_bounds = array<i64: 256, 128>}, {transform_indices = @transform_5, window_bounds = array<i64: 256, 128>}, {transform_indices = @transform_6, window_bounds = array<i64: 256, 128>}, {transform_indices = @transform_7, window_bounds = array<i64: 1, 128>}, {transform_indices = @transform_8, window_bounds = array<i64: 1, 128>}, {transform_indices = @transform_9, window_bounds = array<i64: 8, 128>}, {transform_indices = @transform_10, window_bounds = array<i64: 8, 128>}]} {
    %c0 = arith.constant 0 : index
    %c0_0 = arith.constant 0 : index
    %0 = vector.load %arg1[%c0, %c0_0] : memref<8x256xf32, #tpu.memory_space<vmem>>, vector<8x256xf32>
    %1 = arith.truncf %0 : vector<8x256xf32> to vector<8x256xbf16>
    %c0_1 = arith.constant 0 : index
    %c0_2 = arith.constant 0 : index
    %2 = vector.load %arg2[%c0_1, %c0_2] : memref<8x256xf32, #tpu.memory_space<vmem>>, vector<8x256xf32>
    %3 = arith.truncf %2 : vector<8x256xf32> to vector<8x256xbf16>
    %c0_3 = arith.constant 0 : index
    %c0_4 = arith.constant 0 : index
    %4 = vector.load %arg4[%c0_3, %c0_4] : memref<256x128xbf16, #tpu.memory_space<vmem>>, vector<256x128xbf16>
    %cst = arith.constant dense<0.000000e+00> : vector<8x128xf32>
    %5 = tpu.matmul %1, %4, %cst {dimension_numbers = #tpu.dot_dimension_numbers<[1], [0], [0], [1], [0, 0, 1, 1], [], []>} : vector<8x256xbf16>, vector<256x128xbf16>, vector<8x128xf32> -> vector<8x128xf32>
    %c0_5 = arith.constant 0 : index
    %c0_6 = arith.constant 0 : index
    %6 = vector.load %arg5[%c0_5, %c0_6] : memref<256x128xbf16, #tpu.memory_space<vmem>>, vector<256x128xbf16>
    %cst_7 = arith.constant dense<0.000000e+00> : vector<8x128xf32>
    %7 = tpu.matmul %3, %6, %cst_7 {dimension_numbers = #tpu.dot_dimension_numbers<[1], [0], [0], [1], [0, 0, 1, 1], [], []>} : vector<8x256xbf16>, vector<256x128xbf16>, vector<8x128xf32> -> vector<8x128xf32>
    %8 = arith.addf %5, %7 : vector<8x128xf32>
    %c0_8 = arith.constant 0 : index
    %c0_9 = arith.constant 0 : index
    %9 = vector.load %arg8[%c0_8, %c0_9] : memref<1x128xf32, #tpu.memory_space<vmem>>, vector<1x128xf32>
    %10 = vector.broadcast %9 : vector<1x128xf32> to vector<8x128xf32>
    %11 = arith.addf %8, %10 : vector<8x128xf32>
    %12 = arith.negf %11 : vector<8x128xf32>
    %13 = math.exp %12 : vector<8x128xf32>
    %cst_10 = arith.constant 1.000000e+00 : f32
    %14 = vector.broadcast %cst_10 : f32 to vector<8x128xf32>
    %15 = arith.addf %14, %13 : vector<8x128xf32>
    %16 = arith.divf %14, %15 : vector<8x128xf32>
    %c0_11 = arith.constant 0 : index
    %c0_12 = arith.constant 0 : index
    %17 = vector.load %arg6[%c0_11, %c0_12] : memref<256x128xbf16, #tpu.memory_space<vmem>>, vector<256x128xbf16>
    %cst_13 = arith.constant dense<0.000000e+00> : vector<8x128xf32>
    %18 = tpu.matmul %1, %17, %cst_13 {dimension_numbers = #tpu.dot_dimension_numbers<[1], [0], [0], [1], [0, 0, 1, 1], [], []>} : vector<8x256xbf16>, vector<256x128xbf16>, vector<8x128xf32> -> vector<8x128xf32>
    %c0_14 = arith.constant 0 : index
    %c0_15 = arith.constant 0 : index
    %19 = vector.load %arg7[%c0_14, %c0_15] : memref<256x128xbf16, #tpu.memory_space<vmem>>, vector<256x128xbf16>
    %cst_16 = arith.constant dense<0.000000e+00> : vector<8x128xf32>
    %20 = tpu.matmul %3, %19, %cst_16 {dimension_numbers = #tpu.dot_dimension_numbers<[1], [0], [0], [1], [0, 0, 1, 1], [], []>} : vector<8x256xbf16>, vector<256x128xbf16>, vector<8x128xf32> -> vector<8x128xf32>
    %21 = arith.addf %18, %20 : vector<8x128xf32>
    %c0_17 = arith.constant 0 : index
    %c0_18 = arith.constant 0 : index
    %22 = vector.load %arg9[%c0_17, %c0_18] : memref<1x128xf32, #tpu.memory_space<vmem>>, vector<1x128xf32>
    %23 = vector.broadcast %22 : vector<1x128xf32> to vector<8x128xf32>
    %24 = arith.addf %21, %23 : vector<8x128xf32>
    %25 = arith.negf %24 : vector<8x128xf32>
    %26 = math.exp %25 : vector<8x128xf32>
    %cst_19 = arith.constant 1.000000e+00 : f32
    %27 = vector.broadcast %cst_19 : f32 to vector<8x128xf32>
    %28 = arith.addf %27, %26 : vector<8x128xf32>
    %29 = arith.divf %27, %28 : vector<8x128xf32>
    %c0_20 = arith.constant 0 : index
    %c0_21 = arith.constant 0 : index
    %30 = vector.load %arg10[%c0_20, %c0_21] : memref<8x128xf32, #tpu.memory_space<vmem>>, vector<8x128xf32>
    tpu.vector_store %arg10[%c0_20, %c0_21], %16 {strides = array<i32>} : memref<8x128xf32, #tpu.memory_space<vmem>>, vector<8x128xf32>,
    %c0_22 = arith.constant 0 : index
    %c0_23 = arith.constant 0 : index
    %31 = vector.load %arg3[%c0_22, %c0_23] : memref<8x128xf32, #tpu.memory_space<vmem>>, vector<8x128xf32>
    %32 = arith.mulf %29, %31 : vector<8x128xf32>
    %c0_24 = arith.constant 0 : index
    %c0_25 = arith.constant 0 : index
    %33 = vector.load %arg11[%c0_24, %c0_25] : memref<8x128xf32, #tpu.memory_space<vmem>>, vector<8x128xf32>
    tpu.vector_store %arg11[%c0_24, %c0_25], %32 {strides = array<i32>} : memref<8x128xf32, #tpu.memory_space<vmem>>, vector<8x128xf32>,
    return
  }
  func.func @transform_0(%arg0: i32) -> (i32, i32) {
    %c0_i32 = arith.constant 0 : i32
    %c0_i32_0 = arith.constant 0 : i32
    %c0_i32_1 = arith.constant 0 : i32
    return %c0_i32, %c0_i32_0 : i32, i32
  }
  func.func @transform_1(%arg0: i32) -> (i32, i32) {
    %c0_i32 = arith.constant 0 : i32
    %c0_i32_0 = arith.constant 0 : i32
    %c0_i32_1 = arith.constant 0 : i32
    return %c0_i32, %c0_i32_0 : i32, i32
  }
  func.func @transform_2(%arg0: i32) -> (i32, i32) {
    %c0_i32 = arith.constant 0 : i32
    %c0_i32_0 = arith.constant 0 : i32
    return %c0_i32, %arg0 : i32, i32
  }
  func.func @transform_3(%arg0: i32) -> (i32, i32) {
    %c0_i32 = arith.constant 0 : i32
    %c0_i32_0 = arith.constant 0 : i32
    return %c0_i32, %arg0 : i32, i32
  }
  func.func @transform_4(%arg0: i32) -> (i32, i32) {
    %c0_i32 = arith.constant 0 : i32
    %c0_i32_0 = arith.constant 0 : i32
    return %c0_i32, %arg0 : i32, i32
  }
  func.func @transform_5(%arg0: i32) -> (i32, i32) {
    %c0_i32 = arith.constant 0 : i32
    %c0_i32_0 = arith.constant 0 : i32
    return %c0_i32, %arg0 : i32, i32
  }
  func.func @transform_6(%arg0: i32) -> (i32, i32) {
    %c0_i32 = arith.constant 0 : i32
    %c0_i32_0 = arith.constant 0 : i32
    return %c0_i32, %arg0 : i32, i32
  }
  func.func @transform_7(%arg0: i32) -> (i32, i32) {
    %c0_i32 = arith.constant 0 : i32
    %c0_i32_0 = arith.constant 0 : i32
    return %c0_i32, %arg0 : i32, i32
  }
  func.func @transform_8(%arg0: i32) -> (i32, i32) {
    %c0_i32 = arith.constant 0 : i32
    %c0_i32_0 = arith.constant 0 : i32
    return %c0_i32, %arg0 : i32, i32
  }
  func.func @transform_9(%arg0: i32) -> (i32, i32) {
    %c0_i32 = arith.constant 0 : i32
    %c0_i32_0 = arith.constant 0 : i32
    return %c0_i32, %arg0 : i32, i32
  }
  func.func @transform_10(%arg0: i32) -> (i32, i32) {
    %c0_i32 = arith.constant 0 : i32
    %c0_i32_0 = arith.constant 0 : i32
    return %c0_i32, %arg0 : i32, i32
  }
}

</mosaic_0001>

<llo_original>
// kernel: tpu_custom_call.1
$region0: #{tpu_custom_call.1}
  #allocation0 [shape = 'u32[]', space=smem, size = 0x4, offset = 0x4, fixed_abs, tag = 'smem constant byte address 0x4 - core index']
  #allocation1 [shape = 'u32[144,128]{1,0:T(1,128)}', space=vmem, size = 0x12000, scoped, tag = 'internal scratch']
  %s0 = inlined_call_operand.hbm [shape: f32[8,256], index: 0, kind: input, shape index: {}]
  %s1 = inlined_call_operand.hbm [shape: f32[8,256], index: 1, kind: input, shape index: {}]
  %s2 = inlined_call_operand.hbm [shape: f32[8,256], index: 2, kind: input, shape index: {}]
  %s3 = inlined_call_operand.hbm [shape: bf16[256,256], index: 3, kind: input, shape index: {}]
  %s4 = inlined_call_operand.hbm [shape: bf16[256,256], index: 4, kind: input, shape index: {}]
  %s5 = inlined_call_operand.hbm [shape: bf16[256,256], index: 5, kind: input, shape index: {}]
  %s6 = inlined_call_operand.hbm [shape: bf16[256,256], index: 6, kind: input, shape index: {}]
  %s7 = inlined_call_operand.vmem [shape: f32[1,256], index: 7, kind: input, shape index: {}]
  %s8 = inlined_call_operand.vmem [shape: f32[1,256], index: 8, kind: input, shape index: {}]
  %s9 = inlined_call_operand.hbm [shape: f32[8,256], index: 9, kind: output, shape index: {0}]
  %s10 = inlined_call_operand.hbm [shape: f32[8,256], index: 10, kind: output, shape index: {1}]
  %11 = xla_tuple %s9, %s10
  %s12 = sld [smem:[#allocation0]]
  $region105: #{tpu_custom_call.1} parent=0
    _
  %s14 = ssub.s32 1, %s12
  %s15 = scalar_select 0, %s14, %s12
  $region1: #{tpu_custom_call.1} parent=0
    #allocation2 [shape = 'u8[8192]{0}', space=vmem, size = 0x2000, scoped, tag = 'input window, operand 0, single buffered']
    #allocation3 [shape = 's32[2]{0}', space=sflag, size = 0x8, scoped, tag = 'scoped memory for tpu_custom_call.1']
    #allocation4 [shape = 's32[2]{0}', space=sflag, size = 0x8, scoped, tag = 'scoped memory for tpu_custom_call.1']
    #allocation5 [shape = 'u8[8192]{0}', space=vmem, size = 0x2000, scoped, tag = 'input window, operand 1, single buffered']
    #allocation6 [shape = 's32[1]{0}', space=sflag, size = 0x4, scoped, tag = 'scoped memory for tpu_custom_call.1']
    #allocation7 [shape = 'u8[8192]{0}', space=vmem, size = 0x2000, scoped, tag = 'input window, operand 2']
    #allocation8 [shape = 'u8[131072]{0}', space=vmem, size = 0x20000, scoped, tag = 'input window, operand 3']
    #allocation9 [shape = 'u8[131072]{0}', space=vmem, size = 0x20000, scoped, tag = 'input window, operand 4']
    #allocation10 [shape = 'u8[131072]{0}', space=vmem, size = 0x20000, scoped, tag = 'input window, operand 5']
    #allocation11 [shape = 'u8[131072]{0}', space=vmem, size = 0x20000, scoped, tag = 'input window, operand 6']
    #allocation12 [shape = 'u8[8192]{0}', space=vmem, size = 0x2000, scoped, tag = 'output window, operand 0']
    #allocation13 [shape = 'u8[8192]{0}', space=vmem, size = 0x2000, scoped, tag = 'output window, operand 1']
    #allocation14 [shape = 's32[2]{0}', space=sflag, size = 0x8, scoped, tag = 'scoped memory for tpu_custom_call.1']
    %16 = vsyncpa [#allocation3], 0
    %17 = vsyncpa [#allocation6], 0
    %18 = vsyncpa [#allocation4], 0
    %s19 = scalar_lea.sflag [#allocation4], 1
    %20 = vsyncpa %s19, 0
    %21 = vsyncpa [#allocation14], 0
    %s22 = scalar_lea.sflag [#allocation14], 1
    %23 = vsyncpa %s22, 0
    loop: start=0, step=1, limit=4
    $region2: #{tpu_custom_call.1} parent=1 // loop_pre_header
      _
    $region3: #{tpu_custom_call.1} parent=1 // loop_header
      %s25 = sphi 0, %s29
      %p26 = scmp.ge.s32.totalorder %s25, 4
      %s33 = sphi 0, %s33
      %s35 = sphi 0, %s33
      %s36 = sphi 0, %s35
      %s50 = sphi 0, %s36
      %s54 = sphi 0, %s54
      %s56 = sphi 0, %s54
      %s57 = sphi 0, %s56
      %s71 = sphi 0, %s57
      %s77 = sphi 0, %s79
      %s80 = sphi 0, %s77
      %s81 = sphi 0, %s80
      %s97 = sphi 0, %s81
      %s103 = sphi 0, %s105
      %s106 = sphi 0, %s103
      %s107 = sphi 0, %s106
      %s123 = sphi 0, %s107
      %s129 = sphi 0, %s131
      %s132 = sphi 0, %s129
      %s133 = sphi 0, %s132
      %s149 = sphi 0, %s133
      %s155 = sphi 0, %s157
      %s158 = sphi 0, %s155
      %s159 = sphi 0, %s158
      %s175 = sphi 0, %s159
      %s181 = sphi 0, %s183
      %s184 = sphi 0, %s181
      %s185 = sphi 0, %s184
      %s201 = sphi 0, %s185
      %s207 = sphi 0, %s209
      %s210 = sphi 0, %s207
      %s211 = sphi 0, %s210
      %s227 = sphi 0, %s211
      %s233 = sphi 0, %s235
      %s236 = sphi 0, %s233
      %s237 = sphi 0, %s236
      %s253 = sphi 0, %s237
      %s259 = sphi 0, %s261
      %s262 = sphi 0, %s259
      %s263 = sphi 0, %s262
      %s279 = sphi 0, %s263
      %s285 = sphi 0, %s287
      %s288 = sphi 0, %s285
      %s289 = sphi 0, %s288
      %s305 = sphi 0, %s289
    $region4: #{tpu_custom_call.1} parent=1 // loop_header_branch
      %28 = sbr.rel (%p26) target = $region8
    $region5: #{tpu_custom_call.1} parent=1 // loop_body
      %s30 = ssub.s32 %s25, 1
      %s31 = ssub.s32 %s25, 2
      %s32 = sadd.s32 %s25, 1
      %s34 = sadd.s32 %s33, 1
      %p37 = scmp.eq.s32.totalorder %s25, 1
      %p38 = scmp.ne.s32.totalorder %s33, %s35
      %p39 = scmp.eq.s32.totalorder %s25, 0
      %p40 = por %p38, %p39
      %p41 = scmp.ne.s32.totalorder %s33, %s35
      %p42 = scmp.eq.s32.totalorder %s30, 1
      %p43 = por %p41, %p42
      %p44 = scmp.ne.s32.totalorder %s35, %s36
      %p45 = scmp.eq.s32.totalorder %s30, 0
      %p46 = por %p44, %p45
      %p47 = scmp.ne.s32.totalorder %s35, %s36
      %p48 = scmp.eq.s32.totalorder %s31, 1
      %p49 = por %p47, %p48
      %p51 = scmp.ne.s32.totalorder %s36, %s50
      %p52 = scmp.eq.s32.totalorder %s31, 0
      %p53 = por %p51, %p52
      %s55 = sadd.s32 %s54, 1
      %p58 = scmp.eq.s32.totalorder %s25, 1
      %p59 = scmp.ne.s32.totalorder %s54, %s56
      %p60 = scmp.eq.s32.totalorder %s25, 0
      %p61 = por %p59, %p60
      %p62 = scmp.ne.s32.totalorder %s54, %s56
      %p63 = scmp.eq.s32.totalorder %s30, 1
      %p64 = por %p62, %p63
      %p65 = scmp.ne.s32.totalorder %s56, %s57
      %p66 = scmp.eq.s32.totalorder %s30, 0
      %p67 = por %p65, %p66
      %p68 = scmp.ne.s32.totalorder %s56, %s57
      %p69 = scmp.eq.s32.totalorder %s31, 1
      %p70 = por %p68, %p69
      %p72 = scmp.ne.s32.totalorder %s57, %s71
      %p73 = scmp.eq.s32.totalorder %s31, 0
      %p74 = por %p72, %p73
      %s75 = ssub.s32 %s25, %s32
      %p76 = scmp.eq.s32.totalorder %s75, 0
      %s78 = sadd.s32 %s77, 1
      %s79 = scalar_select %p76, %s77, %s78
      %p82 = pneg %p76
      %p83 = scmp.eq.s32.totalorder %s25, 1
      %p84 = por %p82, %p83
      %p85 = scmp.ne.s32.totalorder %s77, %s80
      %p86 = scmp.eq.s32.totalorder %s25, 0
      %p87 = por %p85, %p86
      %p88 = scmp.ne.s32.totalorder %s77, %s80
      %p89 = scmp.eq.s32.totalorder %s30, 1
      %p90 = por %p88, %p89
      %p91 = scmp.ne.s32.totalorder %s80, %s81
      %p92 = scmp.eq.s32.totalorder %s30, 0
      %p93 = por %p91, %p92
      %p94 = scmp.ne.s32.totalorder %s80, %s81
      %p95 = scmp.eq.s32.totalorder %s31, 1
      %p96 = por %p94, %p95
      %p98 = scmp.ne.s32.totalorder %s81, %s97
      %p99 = scmp.eq.s32.totalorder %s31, 0
      %p100 = por %p98, %p99
      %s101 = ssub.s32 %s25, %s32
      %p102 = scmp.eq.s32.totalorder %s101, 0
      %s104 = sadd.s32 %s103, 1
      %s105 = scalar_select %p102, %s103, %s104
      %p108 = pneg %p102
      %p109 = scmp.eq.s32.totalorder %s25, 1
      %p110 = por %p108, %p109
      %p111 = scmp.ne.s32.totalorder %s103, %s106
      %p112 = scmp.eq.s32.totalorder %s25, 0
      %p113 = por %p111, %p112
      %p114 = scmp.ne.s32.totalorder %s103, %s106
      %p115 = scmp.eq.s32.totalorder %s30, 1
      %p116 = por %p114, %p115
      %p117 = scmp.ne.s32.totalorder %s106, %s107
      %p118 = scmp.eq.s32.totalorder %s30, 0
      %p119 = por %p117, %p118
      %p120 = scmp.ne.s32.totalorder %s106, %s107
      %p121 = scmp.eq.s32.totalorder %s31, 1
      %p122 = por %p120, %p121
      %p124 = scmp.ne.s32.totalorder %s107, %s123
      %p125 = scmp.eq.s32.totalorder %s31, 0
      %p126 = por %p124, %p125
      %s127 = ssub.s32 %s25, %s32
      %p128 = scmp.eq.s32.totalorder %s127, 0
      %s130 = sadd.s32 %s129, 1
      %s131 = scalar_select %p128, %s129, %s130
      %p134 = pneg %p128
      %p135 = scmp.eq.s32.totalorder %s25, 1
      %p136 = por %p134, %p135
      %p137 = scmp.ne.s32.totalorder %s129, %s132
      %p138 = scmp.eq.s32.totalorder %s25, 0
      %p139 = por %p137, %p138
      %p140 = scmp.ne.s32.totalorder %s129, %s132
      %p141 = scmp.eq.s32.totalorder %s30, 1
      %p142 = por %p140, %p141
      %p143 = scmp.ne.s32.totalorder %s132, %s133
      %p144 = scmp.eq.s32.totalorder %s30, 0
      %p145 = por %p143, %p144
      %p146 = scmp.ne.s32.totalorder %s132, %s133
      %p147 = scmp.eq.s32.totalorder %s31, 1
      %p148 = por %p146, %p147
      %p150 = scmp.ne.s32.totalorder %s133, %s149
      %p151 = scmp.eq.s32.totalorder %s31, 0
      %p152 = por %p150, %p151
      %s153 = ssub.s32 %s25, %s32
      %p154 = scmp.eq.s32.totalorder %s153, 0
      %s156 = sadd.s32 %s155, 1
      %s157 = scalar_select %p154, %s155, %s156
      %p160 = pneg %p154
      %p161 = scmp.eq.s32.totalorder %s25, 1
      %p162 = por %p160, %p161
      %p163 = scmp.ne.s32.totalorder %s155, %s158
      %p164 = scmp.eq.s32.totalorder %s25, 0
      %p165 = por %p163, %p164
      %p166 = scmp.ne.s32.totalorder %s155, %s158
      %p167 = scmp.eq.s32.totalorder %s30, 1
      %p168 = por %p166, %p167
      %p169 = scmp.ne.s32.totalorder %s158, %s159
      %p170 = scmp.eq.s32.totalorder %s30, 0
      %p171 = por %p169, %p170
      %p172 = scmp.ne.s32.totalorder %s158, %s159
      %p173 = scmp.eq.s32.totalorder %s31, 1
      %p174 = por %p172, %p173
      %p176 = scmp.ne.s32.totalorder %s159, %s175
      %p177 = scmp.eq.s32.totalorder %s31, 0
      %p178 = por %p176, %p177
      %s179 = ssub.s32 %s25, %s32
      %p180 = scmp.eq.s32.totalorder %s179, 0
      %s182 = sadd.s32 %s181, 1
      %s183 = scalar_select %p180, %s181, %s182
      %p186 = pneg %p180
      %p187 = scmp.eq.s32.totalorder %s25, 1
      %p188 = por %p186, %p187
      %p189 = scmp.ne.s32.totalorder %s181, %s184
      %p190 = scmp.eq.s32.totalorder %s25, 0
      %p191 = por %p189, %p190
      %p192 = scmp.ne.s32.totalorder %s181, %s184
      %p193 = scmp.eq.s32.totalorder %s30, 1
      %p194 = por %p192, %p193
      %p195 = scmp.ne.s32.totalorder %s184, %s185
      %p196 = scmp.eq.s32.totalorder %s30, 0
      %p197 = por %p195, %p196
      %p198 = scmp.ne.s32.totalorder %s184, %s185
      %p199 = scmp.eq.s32.totalorder %s31, 1
      %p200 = por %p198, %p199
      %p202 = scmp.ne.s32.totalorder %s185, %s201
      %p203 = scmp.eq.s32.totalorder %s31, 0
      %p204 = por %p202, %p203
      %s205 = ssub.s32 %s25, %s32
      %p206 = scmp.eq.s32.totalorder %s205, 0
      %s208 = sadd.s32 %s207, 1
      %s209 = scalar_select %p206, %s207, %s208
      %p212 = pneg %p206
      %p213 = scmp.eq.s32.totalorder %s25, 1
      %p214 = por %p212, %p213
      %p215 = scmp.ne.s32.totalorder %s207, %s210
      %p216 = scmp.eq.s32.totalorder %s25, 0
      %p217 = por %p215, %p216
      %p218 = scmp.ne.s32.totalorder %s207, %s210
      %p219 = scmp.eq.s32.totalorder %s30, 1
      %p220 = por %p218, %p219
      %p221 = scmp.ne.s32.totalorder %s210, %s211
      %p222 = scmp.eq.s32.totalorder %s30, 0
      %p223 = por %p221, %p222
      %p224 = scmp.ne.s32.totalorder %s210, %s211
      %p225 = scmp.eq.s32.totalorder %s31, 1
      %p226 = por %p224, %p225
      %p228 = scmp.ne.s32.totalorder %s211, %s227
      %p229 = scmp.eq.s32.totalorder %s31, 0
      %p230 = por %p228, %p229
      %s231 = ssub.s32 %s25, %s32
      %p232 = scmp.eq.s32.totalorder %s231, 0
      %s234 = sadd.s32 %s233, 1
      %s235 = scalar_select %p232, %s233, %s234
      %p238 = pneg %p232
      %p239 = scmp.eq.s32.totalorder %s25, 1
      %p240 = por %p238, %p239
      %p241 = scmp.ne.s32.totalorder %s233, %s236
      %p242 = scmp.eq.s32.totalorder %s25, 0
      %p243 = por %p241, %p242
      %p244 = scmp.ne.s32.totalorder %s233, %s236
      %p245 = scmp.eq.s32.totalorder %s30, 1
      %p246 = por %p244, %p245
      %p247 = scmp.ne.s32.totalorder %s236, %s237
      %p248 = scmp.eq.s32.totalorder %s30, 0
      %p249 = por %p247, %p248
      %p250 = scmp.ne.s32.totalorder %s236, %s237
      %p251 = scmp.eq.s32.totalorder %s31, 1
      %p252 = por %p250, %p251
      %p254 = scmp.ne.s32.totalorder %s237, %s253
      %p255 = scmp.eq.s32.totalorder %s31, 0
      %p256 = por %p254, %p255
      %s257 = ssub.s32 %s25, %s32
      %p258 = scmp.eq.s32.totalorder %s257, 0
      %s260 = sadd.s32 %s259, 1
      %s261 = scalar_select %p258, %s259, %s260
      %p264 = pneg %p258
      %p265 = scmp.eq.s32.totalorder %s25, 1
      %p266 = por %p264, %p265
      %p267 = scmp.ne.s32.totalorder %s259, %s262
      %p268 = scmp.eq.s32.totalorder %s25, 0
      %p269 = por %p267, %p268
      %p270 = scmp.ne.s32.totalorder %s259, %s262
      %p271 = scmp.eq.s32.totalorder %s30, 1
      %p272 = por %p270, %p271
      %p273 = scmp.ne.s32.totalorder %s262, %s263
      %p274 = scmp.eq.s32.totalorder %s30, 0
      %p275 = por %p273, %p274
      %p276 = scmp.ne.s32.totalorder %s262, %s263
      %p277 = scmp.eq.s32.totalorder %s31, 1
      %p278 = por %p276, %p277
      %p280 = scmp.ne.s32.totalorder %s263, %s279
      %p281 = scmp.eq.s32.totalorder %s31, 0
      %p282 = por %p280, %p281
      %s283 = ssub.s32 %s25, %s32
      %p284 = scmp.eq.s32.totalorder %s283, 0
      %s286 = sadd.s32 %s285, 1
      %s287 = scalar_select %p284, %s285, %s286
      %p290 = pneg %p284
      %p291 = scmp.eq.s32.totalorder %s25, 1
      %p292 = por %p290, %p291
      %p293 = scmp.ne.s32.totalorder %s285, %s288
      %p294 = scmp.eq.s32.totalorder %s25, 0
      %p295 = por %p293, %p294
      %p296 = scmp.ne.s32.totalorder %s285, %s288
      %p297 = scmp.eq.s32.totalorder %s30, 1
      %p298 = por %p296, %p297
      %p299 = scmp.ne.s32.totalorder %s288, %s289
      %p300 = scmp.eq.s32.totalorder %s30, 0
      %p301 = por %p299, %p300
      %p302 = scmp.ne.s32.totalorder %s288, %s289
      %p303 = scmp.eq.s32.totalorder %s31, 1
      %p304 = por %p302, %p303
      %p306 = scmp.ne.s32.totalorder %s289, %s305
      %p307 = scmp.eq.s32.totalorder %s31, 0
      %p308 = por %p306, %p307
      %p309 = scmp.le.s32.totalorder 1, %s25
      %p310 = scmp.lt.s32.totalorder %s25, 3
      %p311 = pnand %p309, %p310
      %p312 = pneg %p311
      // Predicated region
      $region9: #{tpu_custom_call.1} parent=5 // pred_check
        _
      $region10: #{tpu_custom_call.1} parent=5 // pred_check_branch
        %314 = sbr.rel (%p311) target = $region12
      $region11: #{tpu_custom_call.1} parent=5 // pred_region
        %s315 = ssub.s32 %s25, 1
        // Predicated region
        $region13: #{tpu_custom_call.1} parent=11 // pred_check
          %p316 = pneg %p46
        $region14: #{tpu_custom_call.1} parent=11 // pred_check_branch
          %318 = sbr.rel (%p316) target = $region16
        $region15: #{tpu_custom_call.1} parent=11 // pred_region
          %s320 = ssub.s32 256, 256
          %321 = vsyncadd [#allocation3], %s320
          %s323 = sshll.u32 [#allocation2], 4
          %s324 = int_to_ptr.vmem [resolvable:$true] %s323
          %326 = dma.hbm_to_vmem [thread:$0]  %s0, 256, %s324, [#allocation3]
        $region16: #{tpu_custom_call.1} parent=11 // pred_fallthru
          _
        // Predicated region
        $region17: #{tpu_custom_call.1} parent=11 // pred_check
          %p327 = pneg %p67
        $region18: #{tpu_custom_call.1} parent=11 // pred_check_branch
          %329 = sbr.rel (%p327) target = $region20
        $region19: #{tpu_custom_call.1} parent=11 // pred_region
          %s331 = ssub.s32 256, 256
          %332 = vsyncadd [#allocation6], %s331
          %s334 = sshll.u32 [#allocation5], 4
          %s335 = int_to_ptr.vmem [resolvable:$true] %s334
          %337 = dma.hbm_to_vmem [thread:$0]  %s1, 256, %s335, [#allocation6]
        $region20: #{tpu_custom_call.1} parent=11 // pred_fallthru
          _
      $region12: #{tpu_custom_call.1} parent=5 // pred_fallthru
        _
      %p338 = scmp.lt.s32.totalorder %s25, 2
      // Predicated region
      $region21: #{tpu_custom_call.1} parent=5 // pred_check
        %p339 = pneg %p338
      $region22: #{tpu_custom_call.1} parent=5 // pred_check_branch
        %341 = sbr.rel (%p339) target = $region24
      $region23: #{tpu_custom_call.1} parent=5 // pred_region
        // Predicated region
        $region25: #{tpu_custom_call.1} parent=23 // pred_check
          %p342 = pneg %p87
        $region26: #{tpu_custom_call.1} parent=23 // pred_check_branch
          %344 = sbr.rel (%p342) target = $region28
        $region27: #{tpu_custom_call.1} parent=23 // pred_region
          %s345 = sand.u32 %s25, 1
          %s346 = scalar_lea.sflag [#allocation3], %s345
          %s347 = sand.u32 %s77, 1
          %s348 = smul.addr %s347, 8
          %s349 = scalar_lea.vmem [#allocation7], %s348
          %s351 = ssub.s32 128, 128
          %352 = vsyncadd %s346, %s351
          %s353 = smul.addr %s25, 128
          %s354 = scalar_lea.hbm %s2, %s353
          %s356 = sshll.u32 %s349, 4
          %s357 = int_to_ptr.vmem [resolvable:$true] %s356
          %359 = dma.hbm_to_vmem [thread:$0]  %s354, 128, %s357, %s346
        $region28: #{tpu_custom_call.1} parent=23 // pred_fallthru
          _
        // Predicated region
        $region29: #{tpu_custom_call.1} parent=23 // pred_check
          %p360 = pneg %p113
        $region30: #{tpu_custom_call.1} parent=23 // pred_check_branch
          %362 = sbr.rel (%p360) target = $region32
        $region31: #{tpu_custom_call.1} parent=23 // pred_region
          %s363 = sand.u32 %s25, 1
          %s364 = scalar_lea.sflag [#allocation3], %s363
          %s365 = sand.u32 %s103, 1
          %s366 = smul.addr %s365, 128
          %s367 = scalar_lea.vmem [#allocation8], %s366
          %s369 = ssub.s32 2048, 2048
          %370 = vsyncadd %s364, %s369
          %s371 = smul.addr %s25, 64
          %s372 = scalar_lea.hbm %s3, %s371
          %s373 = sshll.u32 %s367, 4
          %s374 = int_to_ptr.vmem [resolvable:$true] %s373
          %379 = dma.hbm_to_vmem [thread:$0]  %s372, 2048, %s374, %s364, 128, 64, 4
        $region32: #{tpu_custom_call.1} parent=23 // pred_fallthru
          _
        // Predicated region
        $region33: #{tpu_custom_call.1} parent=23 // pred_check
          %p380 = pneg %p139
        $region34: #{tpu_custom_call.1} parent=23 // pred_check_branch
          %382 = sbr.rel (%p380) target = $region36
        $region35: #{tpu_custom_call.1} parent=23 // pred_region
          %s383 = sand.u32 %s25, 1
          %s384 = scalar_lea.sflag [#allocation3], %s383
          %s385 = sand.u32 %s129, 1
          %s386 = smul.addr %s385, 128
          %s387 = scalar_lea.vmem [#allocation9], %s386
          %s389 = ssub.s32 2048, 2048
          %390 = vsyncadd %s384, %s389
          %s391 = smul.addr %s25, 64
          %s392 = scalar_lea.hbm %s4, %s391
          %s393 = sshll.u32 %s387, 4
          %s394 = int_to_ptr.vmem [resolvable:$true] %s393
          %399 = dma.hbm_to_vmem [thread:$0]  %s392, 2048, %s394, %s384, 128, 64, 4
        $region36: #{tpu_custom_call.1} parent=23 // pred_fallthru
          _
        // Predicated region
        $region37: #{tpu_custom_call.1} parent=23 // pred_check
          %p400 = pneg %p165
        $region38: #{tpu_custom_call.1} parent=23 // pred_check_branch
          %402 = sbr.rel (%p400) target = $region40
        $region39: #{tpu_custom_call.1} parent=23 // pred_region
          %s403 = sand.u32 %s25, 1
          %s404 = scalar_lea.sflag [#allocation3], %s403
          %s405 = sand.u32 %s155, 1
          %s406 = smul.addr %s405, 128
          %s407 = scalar_lea.vmem [#allocation10], %s406
          %s409 = ssub.s32 2048, 2048
          %410 = vsyncadd %s404, %s409
          %s411 = smul.addr %s25, 64
          %s412 = scalar_lea.hbm %s5, %s411
          %s413 = sshll.u32 %s407, 4
          %s414 = int_to_ptr.vmem [resolvable:$true] %s413
          %419 = dma.hbm_to_vmem [thread:$0]  %s412, 2048, %s414, %s404, 128, 64, 4
        $region40: #{tpu_custom_call.1} parent=23 // pred_fallthru
          _
        // Predicated region
        $region41: #{tpu_custom_call.1} parent=23 // pred_check
          %p420 = pneg %p191
        $region42: #{tpu_custom_call.1} parent=23 // pred_check_branch
          %422 = sbr.rel (%p420) target = $region44
        $region43: #{tpu_custom_call.1} parent=23 // pred_region
          %s423 = sand.u32 %s25, 1
          %s424 = scalar_lea.sflag [#allocation3], %s423
          %s425 = sand.u32 %s181, 1
          %s426 = smul.addr %s425, 128
          %s427 = scalar_lea.vmem [#allocation11], %s426
          %s429 = ssub.s32 2048, 2048
          %430 = vsyncadd %s424, %s429
          %s431 = smul.addr %s25, 64
          %s432 = scalar_lea.hbm %s6, %s431
          %s433 = sshll.u32 %s427, 4
          %s434 = int_to_ptr.vmem [resolvable:$true] %s433
          %439 = dma.hbm_to_vmem [thread:$0]  %s432, 2048, %s434, %s424, 128, 64, 4
        $region44: #{tpu_custom_call.1} parent=23 // pred_fallthru
          _
        // Predicated region
        $region45: #{tpu_custom_call.1} parent=23 // pred_check
          %p440 = pneg %p217
        $region46: #{tpu_custom_call.1} parent=23 // pred_check_branch
          %442 = sbr.rel (%p440) target = $region48
        $region47: #{tpu_custom_call.1} parent=23 // pred_region
          %p443 = scmp.lt.s32.totalorder %s25, 1
          %s444 = scalar_select %p443, %s25, 1
          %s445 = scalar_lea.vmem %s7, %s444
        $region48: #{tpu_custom_call.1} parent=23 // pred_fallthru
          _
        // Predicated region
        $region49: #{tpu_custom_call.1} parent=23 // pred_check
          %p446 = pneg %p243
        $region50: #{tpu_custom_call.1} parent=23 // pred_check_branch
          %448 = sbr.rel (%p446) target = $region52
        $region51: #{tpu_custom_call.1} parent=23 // pred_region
          %p449 = scmp.lt.s32.totalorder %s25, 1
          %s450 = scalar_select %p449, %s25, 1
          %s451 = scalar_lea.vmem %s8, %s450
        $region52: #{tpu_custom_call.1} parent=23 // pred_fallthru
          _
      $region24: #{tpu_custom_call.1} parent=5 // pred_fallthru
        _
      %p452 = scmp.le.s32.totalorder 1, %s25
      %p453 = scmp.lt.s32.totalorder %s25, 3
      %p454 = pnand %p452, %p453
      %p455 = pneg %p454
      // Predicated region
      $region53: #{tpu_custom_call.1} parent=5 // pred_check
        _
      $region54: #{tpu_custom_call.1} parent=5 // pred_check_branch
        %457 = sbr.rel (%p454) target = $region56
      $region55: #{tpu_custom_call.1} parent=5 // pred_region
        %s458 = ssub.s32 %s25, 1
        // Predicated region
        $region57: #{tpu_custom_call.1} parent=55 // pred_check
          %p459 = pneg %p46
        $region58: #{tpu_custom_call.1} parent=55 // pred_check_branch
          %461 = sbr.rel (%p459) target = $region60
        $region59: #{tpu_custom_call.1} parent=55 // pred_region
          %462 = dma.done [#allocation3], 256
        $region60: #{tpu_custom_call.1} parent=55 // pred_fallthru
          _
        // Predicated region
        $region61: #{tpu_custom_call.1} parent=55 // pred_check
          %p463 = pneg %p67
        $region62: #{tpu_custom_call.1} parent=55 // pred_check_branch
          %465 = sbr.rel (%p463) target = $region64
        $region63: #{tpu_custom_call.1} parent=55 // pred_region
          %466 = dma.done [#allocation6], 256
        $region64: #{tpu_custom_call.1} parent=55 // pred_fallthru
          _
        %s467 = sand.u32 %s30, 1
        %s468 = scalar_lea.sflag [#allocation3], %s467
        %s469 = sand.u32 %s80, 1
        %s470 = smul.addr %s469, 8
        %s471 = scalar_lea.vmem [#allocation7], %s470
        // Predicated region
        $region65: #{tpu_custom_call.1} parent=55 // pred_check
          %p472 = pneg %p93
        $region66: #{tpu_custom_call.1} parent=55 // pred_check_branch
          %474 = sbr.rel (%p472) target = $region68
        $region67: #{tpu_custom_call.1} parent=55 // pred_region
          %475 = dma.done %s468, 128
        $region68: #{tpu_custom_call.1} parent=55 // pred_fallthru
          _
        %s476 = sand.u32 %s30, 1
        %s477 = scalar_lea.sflag [#allocation3], %s476
        %s478 = sand.u32 %s106, 1
        %s479 = smul.addr %s478, 128
        %s480 = scalar_lea.vmem [#allocation8], %s479
        // Predicated region
        $region69: #{tpu_custom_call.1} parent=55 // pred_check
          %p481 = pneg %p119
        $region70: #{tpu_custom_call.1} parent=55 // pred_check_branch
          %483 = sbr.rel (%p481) target = $region72
        $region71: #{tpu_custom_call.1} parent=55 // pred_region
          %484 = dma.done %s477, 2048
        $region72: #{tpu_custom_call.1} parent=55 // pred_fallthru
          _
        %s485 = sand.u32 %s30, 1
        %s486 = scalar_lea.sflag [#allocation3], %s485
        %s487 = sand.u32 %s132, 1
        %s488 = smul.addr %s487, 128
        %s489 = scalar_lea.vmem [#allocation9], %s488
        // Predicated region
        $region73: #{tpu_custom_call.1} parent=55 // pred_check
          %p490 = pneg %p145
        $region74: #{tpu_custom_call.1} parent=55 // pred_check_branch
          %492 = sbr.rel (%p490) target = $region76
        $region75: #{tpu_custom_call.1} parent=55 // pred_region
          %493 = dma.done %s486, 2048
        $region76: #{tpu_custom_call.1} parent=55 // pred_fallthru
          _
        %s494 = sand.u32 %s30, 1
        %s495 = scalar_lea.sflag [#allocation3], %s494
        %s496 = sand.u32 %s158, 1
        %s497 = smul.addr %s496, 128
        %s498 = scalar_lea.vmem [#allocation10], %s497
        // Predicated region
        $region77: #{tpu_custom_call.1} parent=55 // pred_check
          %p499 = pneg %p171
        $region78: #{tpu_custom_call.1} parent=55 // pred_check_branch
          %501 = sbr.rel (%p499) target = $region80
        $region79: #{tpu_custom_call.1} parent=55 // pred_region
          %502 = dma.done %s495, 2048
        $region80: #{tpu_custom_call.1} parent=55 // pred_fallthru
          _
        %s503 = sand.u32 %s30, 1
        %s504 = scalar_lea.sflag [#allocation3], %s503
        %s505 = sand.u32 %s184, 1
        %s506 = smul.addr %s505, 128
        %s507 = scalar_lea.vmem [#allocation11], %s506
        // Predicated region
        $region81: #{tpu_custom_call.1} parent=55 // pred_check
          %p508 = pneg %p197
        $region82: #{tpu_custom_call.1} parent=55 // pred_check_branch
          %510 = sbr.rel (%p508) target = $region84
        $region83: #{tpu_custom_call.1} parent=55 // pred_region
          %511 = dma.done %s504, 2048
        $region84: #{tpu_custom_call.1} parent=55 // pred_fallthru
          _
        %p512 = pneg %p46
        %p513 = pneg %p43
        %p514 = pneg %p67
        %p515 = pneg %p64
        %s516 = sand.u32 %s30, 1
        %s517 = scalar_lea.sflag [#allocation3], %s516
        %s518 = sand.u32 %s80, 1
        %s519 = smul.addr %s518, 8
        %s520 = scalar_lea.vmem [#allocation7], %s519
        %p521 = pneg %p93
        %p522 = pneg %p90
        %s523 = sand.u32 %s30, 1
        %s524 = scalar_lea.sflag [#allocation3], %s523
        %s525 = sand.u32 %s106, 1
        %s526 = smul.addr %s525, 128
        %s527 = scalar_lea.vmem [#allocation8], %s526
        %p528 = pneg %p119
        %p529 = pneg %p116
        %s530 = sand.u32 %s30, 1
        %s531 = scalar_lea.sflag [#allocation3], %s530
        %s532 = sand.u32 %s132, 1
        %s533 = smul.addr %s532, 128
        %s534 = scalar_lea.vmem [#allocation9], %s533
        %p535 = pneg %p145
        %p536 = pneg %p142
        %s537 = sand.u32 %s30, 1
        %s538 = scalar_lea.sflag [#allocation3], %s537
        %s539 = sand.u32 %s158, 1
        %s540 = smul.addr %s539, 128
        %s541 = scalar_lea.vmem [#allocation10], %s540
        %p542 = pneg %p171
        %p543 = pneg %p168
        %s544 = sand.u32 %s30, 1
        %s545 = scalar_lea.sflag [#allocation3], %s544
        %s546 = sand.u32 %s184, 1
        %s547 = smul.addr %s546, 128
        %s548 = scalar_lea.vmem [#allocation11], %s547
        %p549 = pneg %p197
        %p550 = pneg %p194
        %p551 = scmp.lt.s32.totalorder %s30, 1
        %s552 = scalar_select %p551, %s30, 1
        %s553 = scalar_lea.vmem %s7, %s552
        %p554 = pneg %p223
        %p555 = pneg %p220
        %p556 = scmp.lt.s32.totalorder %s30, 1
        %s557 = scalar_select %p556, %s30, 1
        %s558 = scalar_lea.vmem %s8, %s557
        %p559 = pneg %p249
        %p560 = pneg %p246
        %p561 = pneg %p275
        %p562 = pneg %p272
        %s563 = sand.u32 %s262, 1
        %s564 = scalar_lea.sflag [#allocation4], %s563
        %s565 = sand.u32 %s262, 1
        %s566 = smul.addr %s565, 8
        %s567 = scalar_lea.vmem [#allocation12], %s566
        %p568 = pneg %p301
        %p569 = pneg %p298
        %s570 = sand.u32 %s288, 1
        %s571 = scalar_lea.sflag [#allocation14], %s570
        %s572 = sand.u32 %s288, 1
        %s573 = smul.addr %s572, 8
        %s574 = scalar_lea.vmem [#allocation13], %s573
        %p575 = scmp.lt.s32.totalorder %s30, 1
        %s576 = scalar_select %p575, %s30, 1
        %s577 = scalar_lea.vmem %s7, %s576
        %p578 = scmp.lt.s32.totalorder %s30, 1
        %s579 = scalar_select %p578, %s30, 1
        %s580 = scalar_lea.vmem %s8, %s579
        %v582 = vld [vmem:[#allocation2] sm:$0xff]
        %v583 = vld [vmem:[#allocation2 + $0x8] sm:$0xff]
        %v584 = vpack.c.bf16 %v582, %v582
        %v585 = vpack.c.bf16 %v583, %v583
        %v586 = vld [vmem:[#allocation5] sm:$0xff]
        %v587 = vld [vmem:[#allocation5 + $0x8] sm:$0xff]
        %v588 = vpack.c.bf16 %v586, %v586
        %v589 = vpack.c.bf16 %v587, %v587
        %v590 = vld [vmem:[%s480] sm:$0xf]
        %v591 = vld [vmem:[%s480 + $0x4] sm:$0xf]
        %v592 = vld [vmem:[%s480 + $0x8] sm:$0xf]
        %v593 = vld [vmem:[%s480 + $0xc] sm:$0xf]
        %v594 = vld [vmem:[%s480 + $0x10] sm:$0xf]
        %v595 = vld [vmem:[%s480 + $0x14] sm:$0xf]
        %v596 = vld [vmem:[%s480 + $0x18] sm:$0xf]
        %v597 = vld [vmem:[%s480 + $0x1c] sm:$0xf]
        %v598 = vld [vmem:[%s480 + $0x20] sm:$0xf]
        %v599 = vld [vmem:[%s480 + $0x24] sm:$0xf]
        %v600 = vld [vmem:[%s480 + $0x28] sm:$0xf]
        %v601 = vld [vmem:[%s480 + $0x2c] sm:$0xf]
        %v602 = vld [vmem:[%s480 + $0x30] sm:$0xf]
        %v603 = vld [vmem:[%s480 + $0x34] sm:$0xf]
        %v604 = vld [vmem:[%s480 + $0x38] sm:$0xf]
        %v605 = vld [vmem:[%s480 + $0x3c] sm:$0xf]
        %v606 = vld [vmem:[%s480 + $0x40] sm:$0xf]
        %v607 = vld [vmem:[%s480 + $0x44] sm:$0xf]
        %v608 = vld [vmem:[%s480 + $0x48] sm:$0xf]
        %v609 = vld [vmem:[%s480 + $0x4c] sm:$0xf]
        %v610 = vld [vmem:[%s480 + $0x50] sm:$0xf]
        %v611 = vld [vmem:[%s480 + $0x54] sm:$0xf]
        %v612 = vld [vmem:[%s480 + $0x58] sm:$0xf]
        %v613 = vld [vmem:[%s480 + $0x5c] sm:$0xf]
        %v614 = vld [vmem:[%s480 + $0x60] sm:$0xf]
        %v615 = vld [vmem:[%s480 + $0x64] sm:$0xf]
        %v616 = vld [vmem:[%s480 + $0x68] sm:$0xf]
        %v617 = vld [vmem:[%s480 + $0x6c] sm:$0xf]
        %v618 = vld [vmem:[%s480 + $0x70] sm:$0xf]
        %v619 = vld [vmem:[%s480 + $0x74] sm:$0xf]
        %v620 = vld [vmem:[%s480 + $0x78] sm:$0xf]
        %v621 = vld [vmem:[%s480 + $0x7c] sm:$0xf]
        %v622 = vld [vmem:[%s489] sm:$0xf]
        %v623 = vld [vmem:[%s489 + $0x4] sm:$0xf]
        %v624 = vld [vmem:[%s489 + $0x8] sm:$0xf]
        %v625 = vld [vmem:[%s489 + $0xc] sm:$0xf]
        %v626 = vld [vmem:[%s489 + $0x10] sm:$0xf]
        %v627 = vld [vmem:[%s489 + $0x14] sm:$0xf]
        %v628 = vld [vmem:[%s489 + $0x18] sm:$0xf]
        %v629 = vld [vmem:[%s489 + $0x1c] sm:$0xf]
        %v630 = vld [vmem:[%s489 + $0x20] sm:$0xf]
        %v631 = vld [vmem:[%s489 + $0x24] sm:$0xf]
        %v632 = vld [vmem:[%s489 + $0x28] sm:$0xf]
        %v633 = vld [vmem:[%s489 + $0x2c] sm:$0xf]
        %v634 = vld [vmem:[%s489 + $0x30] sm:$0xf]
        %v635 = vld [vmem:[%s489 + $0x34] sm:$0xf]
        %v636 = vld [vmem:[%s489 + $0x38] sm:$0xf]
        %v637 = vld [vmem:[%s489 + $0x3c] sm:$0xf]
        %v638 = vld [vmem:[%s489 + $0x40] sm:$0xf]
        %v639 = vld [vmem:[%s489 + $0x44] sm:$0xf]
        %v640 = vld [vmem:[%s489 + $0x48] sm:$0xf]
        %v641 = vld [vmem:[%s489 + $0x4c] sm:$0xf]
        %v642 = vld [vmem:[%s489 + $0x50] sm:$0xf]
        %v643 = vld [vmem:[%s489 + $0x54] sm:$0xf]
        %v644 = vld [vmem:[%s489 + $0x58] sm:$0xf]
        %v645 = vld [vmem:[%s489 + $0x5c] sm:$0xf]
        %v646 = vld [vmem:[%s489 + $0x60] sm:$0xf]
        %v647 = vld [vmem:[%s489 + $0x64] sm:$0xf]
        %v648 = vld [vmem:[%s489 + $0x68] sm:$0xf]
        %v649 = vld [vmem:[%s489 + $0x6c] sm:$0xf]
        %v650 = vld [vmem:[%s489 + $0x70] sm:$0xf]
        %v651 = vld [vmem:[%s489 + $0x74] sm:$0xf]
        %v652 = vld [vmem:[%s489 + $0x78] sm:$0xf]
        %v653 = vld [vmem:[%s489 + $0x7c] sm:$0xf]
        %v686 = vunpack.c.l.b16 %v622
        %v687 = vunpack.c.l.b16 %v623
        %v688 = vunpack.c.l.b16 %v624
        %v689 = vunpack.c.l.b16 %v625
        %v690 = vunpack.c.l.b16 %v626
        %v691 = vunpack.c.l.b16 %v627
        %v692 = vunpack.c.l.b16 %v628
        %v693 = vunpack.c.l.b16 %v629
        %v694 = vunpack.c.l.b16 %v630
        %v695 = vunpack.c.l.b16 %v631
        %v696 = vunpack.c.l.b16 %v632
        %v697 = vunpack.c.l.b16 %v633
        %v698 = vunpack.c.l.b16 %v634
        %v699 = vunpack.c.l.b16 %v635
        %v700 = vunpack.c.l.b16 %v636
        %v701 = vunpack.c.l.b16 %v637
        %v702 = vunpack.c.l.b16 %v638
        %v703 = vunpack.c.l.b16 %v639
        %v704 = vunpack.c.l.b16 %v640
        %v705 = vunpack.c.l.b16 %v641
        %v706 = vunpack.c.l.b16 %v642
        %v707 = vunpack.c.l.b16 %v643
        %v708 = vunpack.c.l.b16 %v644
        %v709 = vunpack.c.l.b16 %v645
        %v710 = vunpack.c.l.b16 %v646
        %v711 = vunpack.c.l.b16 %v647
        %v712 = vunpack.c.l.b16 %v648
        %v713 = vunpack.c.l.b16 %v649
        %v714 = vunpack.c.l.b16 %v650
        %v715 = vunpack.c.l.b16 %v651
        %v716 = vunpack.c.l.b16 %v652
        %v717 = vunpack.c.l.b16 %v653
        %v718 = vpack.c.b16 %v687, %v686
        %v719 = vpack.c.b16 %v689, %v688
        %v720 = vpack.c.b16 %v691, %v690
        %v721 = vpack.c.b16 %v693, %v692
        %v722 = vpack.c.b16 %v695, %v694
        %v723 = vpack.c.b16 %v697, %v696
        %v724 = vpack.c.b16 %v699, %v698
        %v725 = vpack.c.b16 %v701, %v700
        %v726 = vpack.c.b16 %v703, %v702
        %v727 = vpack.c.b16 %v705, %v704
        %v728 = vpack.c.b16 %v707, %v706
        %v729 = vpack.c.b16 %v709, %v708
        %v730 = vpack.c.b16 %v711, %v710
        %v731 = vpack.c.b16 %v713, %v712
        %v732 = vpack.c.b16 %v715, %v714
        %v733 = vpack.c.b16 %v717, %v716
        %750 = vmatprep.subr.bf16.mxu0 0
        %751 = vmatpush1.bf16.msra.mxu0 %v725
        %752 = vmatprep.subr.bf16.mxu0 0
        %753 = vmatpush1.bf16.msra.mxu0 %v724
        %754 = vmatprep.subr.bf16.mxu0 0
        %755 = vmatpush1.bf16.msra.mxu0 %v723
        %756 = vmatprep.subr.bf16.mxu0 0
        %757 = vmatpush1.bf16.msra.mxu0 %v722
        %758 = vmatprep.subr.bf16.mxu0 0
        %759 = vmatpush1.bf16.msra.mxu0 %v721
        %760 = vmatprep.subr.bf16.mxu0 0
        %761 = vmatpush1.bf16.msra.mxu0 %v720
        %762 = vmatprep.subr.bf16.mxu0 0
        %763 = vmatpush1.bf16.msra.mxu0 %v719
        %764 = vmatprep.subr.bf16.mxu0 0
        %765 = vmatpush1.bf16.msra.mxu0 %v718
        %766 = vmatprep.subr.bf16.mxu0 0
        %767 = vmatpush2.bf16.msra.mxu0 %v733
        %768 = vmatprep.subr.bf16.mxu0 0
        %769 = vmatpush2.bf16.msra.mxu0 %v732
        %770 = vmatprep.subr.bf16.mxu0 0
        %771 = vmatpush2.bf16.msra.mxu0 %v731
        %772 = vmatprep.subr.bf16.mxu0 0
        %773 = vmatpush2.bf16.msra.mxu0 %v730
        %774 = vmatprep.subr.bf16.mxu0 0
        %775 = vmatpush2.bf16.msra.mxu0 %v729
        %776 = vmatprep.subr.bf16.mxu0 0
        %777 = vmatpush2.bf16.msra.mxu0 %v728
        %778 = vmatprep.subr.bf16.mxu0 0
        %779 = vmatpush2.bf16.msra.mxu0 %v727
        %780 = vmatprep.subr.bf16.mxu0 0
        %781 = vmatpush2.bf16.msra.mxu0 %v726
        %782 = vmatprep.mubr.bf16.mxu0 %v589
        %783 = vmatmul.mubr.bf16.gmra.mxu0 %v588
        %v784 = vpop.f32.mrf.mxu0
        %v785 = vadd.f32 0.0, %v784
        %v786 = vpop.f32.mrf.mxu0
        %v787 = vpop.f32.mrf.mxu0
        %v788 = vpop.f32.mrf.mxu0
        %789 = vdwg.mxu0
        %v822 = vunpack.c.l.b16 %v590
        %v823 = vunpack.c.l.b16 %v591
        %v824 = vunpack.c.l.b16 %v592
        %v825 = vunpack.c.l.b16 %v593
        %v826 = vunpack.c.l.b16 %v594
        %v827 = vunpack.c.l.b16 %v595
        %v828 = vunpack.c.l.b16 %v596
        %v829 = vunpack.c.l.b16 %v597
        %v830 = vunpack.c.l.b16 %v598
        %v831 = vunpack.c.l.b16 %v599
        %v832 = vunpack.c.l.b16 %v600
        %v833 = vunpack.c.l.b16 %v601
        %v834 = vunpack.c.l.b16 %v602
        %v835 = vunpack.c.l.b16 %v603
        %v836 = vunpack.c.l.b16 %v604
        %v837 = vunpack.c.l.b16 %v605
        %v838 = vunpack.c.l.b16 %v606
        %v839 = vunpack.c.l.b16 %v607
        %v840 = vunpack.c.l.b16 %v608
        %v841 = vunpack.c.l.b16 %v609
        %v842 = vunpack.c.l.b16 %v610
        %v843 = vunpack.c.l.b16 %v611
        %v844 = vunpack.c.l.b16 %v612
        %v845 = vunpack.c.l.b16 %v613
        %v846 = vunpack.c.l.b16 %v614
        %v847 = vunpack.c.l.b16 %v615
        %v848 = vunpack.c.l.b16 %v616
        %v849 = vunpack.c.l.b16 %v617
        %v850 = vunpack.c.l.b16 %v618
        %v851 = vunpack.c.l.b16 %v619
        %v852 = vunpack.c.l.b16 %v620
        %v853 = vunpack.c.l.b16 %v621
        %v854 = vpack.c.b16 %v823, %v822
        %v855 = vpack.c.b16 %v825, %v824
        %v856 = vpack.c.b16 %v827, %v826
        %v857 = vpack.c.b16 %v829, %v828
        %v858 = vpack.c.b16 %v831, %v830
        %v859 = vpack.c.b16 %v833, %v832
        %v860 = vpack.c.b16 %v835, %v834
        %v861 = vpack.c.b16 %v837, %v836
        %v862 = vpack.c.b16 %v839, %v838
        %v863 = vpack.c.b16 %v841, %v840
        %v864 = vpack.c.b16 %v843, %v842
        %v865 = vpack.c.b16 %v845, %v844
        %v866 = vpack.c.b16 %v847, %v846
        %v867 = vpack.c.b16 %v849, %v848
        %v868 = vpack.c.b16 %v851, %v850
        %v869 = vpack.c.b16 %v853, %v852
        %886 = vmatprep.subr.bf16.mxu0 0
        %887 = vmatpush1.bf16.msra.mxu0 %v861
        %888 = vmatprep.subr.bf16.mxu0 0
        %889 = vmatpush1.bf16.msra.mxu0 %v860
        %890 = vmatprep.subr.bf16.mxu0 0
        %891 = vmatpush1.bf16.msra.mxu0 %v859
        %892 = vmatprep.subr.bf16.mxu0 0
        %893 = vmatpush1.bf16.msra.mxu0 %v858
        %894 = vmatprep.subr.bf16.mxu0 0
        %895 = vmatpush1.bf16.msra.mxu0 %v857
        %896 = vmatprep.subr.bf16.mxu0 0
        %897 = vmatpush1.bf16.msra.mxu0 %v856
        %898 = vmatprep.subr.bf16.mxu0 0
        %899 = vmatpush1.bf16.msra.mxu0 %v855
        %900 = vmatprep.subr.bf16.mxu0 0
        %901 = vmatpush1.bf16.msra.mxu0 %v854
        %902 = vmatprep.subr.bf16.mxu0 0
        %903 = vmatpush2.bf16.msra.mxu0 %v869
        %904 = vmatprep.subr.bf16.mxu0 0
        %905 = vmatpush2.bf16.msra.mxu0 %v868
        %906 = vmatprep.subr.bf16.mxu0 0
        %907 = vmatpush2.bf16.msra.mxu0 %v867
        %908 = vmatprep.subr.bf16.mxu0 0
        %909 = vmatpush2.bf16.msra.mxu0 %v866
        %910 = vmatprep.subr.bf16.mxu0 0
        %911 = vmatpush2.bf16.msra.mxu0 %v865
        %912 = vmatprep.subr.bf16.mxu0 0
        %913 = vmatpush2.bf16.msra.mxu0 %v864
        %914 = vmatprep.subr.bf16.mxu0 0
        %915 = vmatpush2.bf16.msra.mxu0 %v863
        %916 = vmatprep.subr.bf16.mxu0 0
        %917 = vmatpush2.bf16.msra.mxu0 %v862
        %918 = vmatprep.mubr.bf16.mxu0 %v585
        %919 = vmatmul.mubr.bf16.gmra.mxu0 %v584
        %v920 = vpop.f32.mrf.mxu0
        %v921 = vadd.f32 %v785, %v920
        %v922 = vpop.f32.mrf.mxu0
        %v923 = vpop.f32.mrf.mxu0
        %v924 = vpop.f32.mrf.mxu0
        %925 = vdwg.mxu0
        %v926 = vld [vmem:[%s577] sm:$0x1]
        %v928 = vlaneseq
        %v929 = vshrl.u32 %v928, 7
        %v930 = vsub.s32 0, %v929
        %v931 = vrot.slane %v926, %v930
        %v933 = vadd.f32 %v921, %v931
        %v934 = vxor.u32 %v933, 2147483648
        %v935 = vmul.f32 %v934, 1.442695
        %v936 = vpow.pop %v935
        %v937 = vadd.f32 %v936, 1.0
        %v938 = vrcp.pop %v937
        %v939 = vmul.f32 1.0, %v938
        %v940 = vld [vmem:[%s498] sm:$0xf]
        %v941 = vld [vmem:[%s498 + $0x4] sm:$0xf]
        %v942 = vld [vmem:[%s498 + $0x8] sm:$0xf]
        %v943 = vld [vmem:[%s498 + $0xc] sm:$0xf]
        %v944 = vld [vmem:[%s498 + $0x10] sm:$0xf]
        %v945 = vld [vmem:[%s498 + $0x14] sm:$0xf]
        %v946 = vld [vmem:[%s498 + $0x18] sm:$0xf]
        %v947 = vld [vmem:[%s498 + $0x1c] sm:$0xf]
        %v948 = vld [vmem:[%s498 + $0x20] sm:$0xf]
        %v949 = vld [vmem:[%s498 + $0x24] sm:$0xf]
        %v950 = vld [vmem:[%s498 + $0x28] sm:$0xf]
        %v951 = vld [vmem:[%s498 + $0x2c] sm:$0xf]
        %v952 = vld [vmem:[%s498 + $0x30] sm:$0xf]
        %v953 = vld [vmem:[%s498 + $0x34] sm:$0xf]
        %v954 = vld [vmem:[%s498 + $0x38] sm:$0xf]
        %v955 = vld [vmem:[%s498 + $0x3c] sm:$0xf]
        %v956 = vld [vmem:[%s498 + $0x40] sm:$0xf]
        %v957 = vld [vmem:[%s498 + $0x44] sm:$0xf]
        %v958 = vld [vmem:[%s498 + $0x48] sm:$0xf]
        %v959 = vld [vmem:[%s498 + $0x4c] sm:$0xf]
        %v960 = vld [vmem:[%s498 + $0x50] sm:$0xf]
        %v961 = vld [vmem:[%s498 + $0x54] sm:$0xf]
        %v962 = vld [vmem:[%s498 + $0x58] sm:$0xf]
        %v963 = vld [vmem:[%s498 + $0x5c] sm:$0xf]
        %v964 = vld [vmem:[%s498 + $0x60] sm:$0xf]
        %v965 = vld [vmem:[%s498 + $0x64] sm:$0xf]
        %v966 = vld [vmem:[%s498 + $0x68] sm:$0xf]
        %v967 = vld [vmem:[%s498 + $0x6c] sm:$0xf]
        %v968 = vld [vmem:[%s498 + $0x70] sm:$0xf]
        %v969 = vld [vmem:[%s498 + $0x74] sm:$0xf]
        %v970 = vld [vmem:[%s498 + $0x78] sm:$0xf]
        %v971 = vld [vmem:[%s498 + $0x7c] sm:$0xf]
        %v972 = vld [vmem:[%s507] sm:$0xf]
        %v973 = vld [vmem:[%s507 + $0x4] sm:$0xf]
        %v974 = vld [vmem:[%s507 + $0x8] sm:$0xf]
        %v975 = vld [vmem:[%s507 + $0xc] sm:$0xf]
        %v976 = vld [vmem:[%s507 + $0x10] sm:$0xf]
        %v977 = vld [vmem:[%s507 + $0x14] sm:$0xf]
        %v978 = vld [vmem:[%s507 + $0x18] sm:$0xf]
        %v979 = vld [vmem:[%s507 + $0x1c] sm:$0xf]
        %v980 = vld [vmem:[%s507 + $0x20] sm:$0xf]
        %v981 = vld [vmem:[%s507 + $0x24] sm:$0xf]
        %v982 = vld [vmem:[%s507 + $0x28] sm:$0xf]
        %v983 = vld [vmem:[%s507 + $0x2c] sm:$0xf]
        %v984 = vld [vmem:[%s507 + $0x30] sm:$0xf]
        %v985 = vld [vmem:[%s507 + $0x34] sm:$0xf]
        %v986 = vld [vmem:[%s507 + $0x38] sm:$0xf]
        %v987 = vld [vmem:[%s507 + $0x3c] sm:$0xf]
        %v988 = vld [vmem:[%s507 + $0x40] sm:$0xf]
        %v989 = vld [vmem:[%s507 + $0x44] sm:$0xf]
        %v990 = vld [vmem:[%s507 + $0x48] sm:$0xf]
        %v991 = vld [vmem:[%s507 + $0x4c] sm:$0xf]
        %v992 = vld [vmem:[%s507 + $0x50] sm:$0xf]
        %v993 = vld [vmem:[%s507 + $0x54] sm:$0xf]
        %v994 = vld [vmem:[%s507 + $0x58] sm:$0xf]
        %v995 = vld [vmem:[%s507 + $0x5c] sm:$0xf]
        %v996 = vld [vmem:[%s507 + $0x60] sm:$0xf]
        %v997 = vld [vmem:[%s507 + $0x64] sm:$0xf]
        %v998 = vld [vmem:[%s507 + $0x68] sm:$0xf]
        %v999 = vld [vmem:[%s507 + $0x6c] sm:$0xf]
        %v1000 = vld [vmem:[%s507 + $0x70] sm:$0xf]
        %v1001 = vld [vmem:[%s507 + $0x74] sm:$0xf]
        %v1002 = vld [vmem:[%s507 + $0x78] sm:$0xf]
        %v1003 = vld [vmem:[%s507 + $0x7c] sm:$0xf]
        %v1036 = vunpack.c.l.b16 %v972
        %v1037 = vunpack.c.l.b16 %v973
        %v1038 = vunpack.c.l.b16 %v974
        %v1039 = vunpack.c.l.b16 %v975
        %v1040 = vunpack.c.l.b16 %v976
        %v1041 = vunpack.c.l.b16 %v977
        %v1042 = vunpack.c.l.b16 %v978
        %v1043 = vunpack.c.l.b16 %v979
        %v1044 = vunpack.c.l.b16 %v980
        %v1045 = vunpack.c.l.b16 %v981
        %v1046 = vunpack.c.l.b16 %v982
        %v1047 = vunpack.c.l.b16 %v983
        %v1048 = vunpack.c.l.b16 %v984
        %v1049 = vunpack.c.l.b16 %v985
        %v1050 = vunpack.c.l.b16 %v986
        %v1051 = vunpack.c.l.b16 %v987
        %v1052 = vunpack.c.l.b16 %v988
        %v1053 = vunpack.c.l.b16 %v989
        %v1054 = vunpack.c.l.b16 %v990
        %v1055 = vunpack.c.l.b16 %v991
        %v1056 = vunpack.c.l.b16 %v992
        %v1057 = vunpack.c.l.b16 %v993
        %v1058 = vunpack.c.l.b16 %v994
        %v1059 = vunpack.c.l.b16 %v995
        %v1060 = vunpack.c.l.b16 %v996
        %v1061 = vunpack.c.l.b16 %v997
        %v1062 = vunpack.c.l.b16 %v998
        %v1063 = vunpack.c.l.b16 %v999
        %v1064 = vunpack.c.l.b16 %v1000
        %v1065 = vunpack.c.l.b16 %v1001
        %v1066 = vunpack.c.l.b16 %v1002
        %v1067 = vunpack.c.l.b16 %v1003
        %v1068 = vpack.c.b16 %v1037, %v1036
        %v1069 = vpack.c.b16 %v1039, %v1038
        %v1070 = vpack.c.b16 %v1041, %v1040
        %v1071 = vpack.c.b16 %v1043, %v1042
        %v1072 = vpack.c.b16 %v1045, %v1044
        %v1073 = vpack.c.b16 %v1047, %v1046
        %v1074 = vpack.c.b16 %v1049, %v1048
        %v1075 = vpack.c.b16 %v1051, %v1050
        %v1076 = vpack.c.b16 %v1053, %v1052
        %v1077 = vpack.c.b16 %v1055, %v1054
        %v1078 = vpack.c.b16 %v1057, %v1056
        %v1079 = vpack.c.b16 %v1059, %v1058
        %v1080 = vpack.c.b16 %v1061, %v1060
        %v1081 = vpack.c.b16 %v1063, %v1062
        %v1082 = vpack.c.b16 %v1065, %v1064
        %v1083 = vpack.c.b16 %v1067, %v1066
        %1100 = vmatprep.subr.bf16.mxu0 0
        %1101 = vmatpush1.bf16.msra.mxu0 %v1075
        %1102 = vmatprep.subr.bf16.mxu0 0
        %1103 = vmatpush1.bf16.msra.mxu0 %v1074
        %1104 = vmatprep.subr.bf16.mxu0 0
        %1105 = vmatpush1.bf16.msra.mxu0 %v1073
        %1106 = vmatprep.subr.bf16.mxu0 0
        %1107 = vmatpush1.bf16.msra.mxu0 %v1072
        %1108 = vmatprep.subr.bf16.mxu0 0
        %1109 = vmatpush1.bf16.msra.mxu0 %v1071
        %1110 = vmatprep.subr.bf16.mxu0 0
        %1111 = vmatpush1.bf16.msra.mxu0 %v1070
        %1112 = vmatprep.subr.bf16.mxu0 0
        %1113 = vmatpush1.bf16.msra.mxu0 %v1069
        %1114 = vmatprep.subr.bf16.mxu0 0
        %1115 = vmatpush1.bf16.msra.mxu0 %v1068
        %1116 = vmatprep.subr.bf16.mxu0 0
        %1117 = vmatpush2.bf16.msra.mxu0 %v1083
        %1118 = vmatprep.subr.bf16.mxu0 0
        %1119 = vmatpush2.bf16.msra.mxu0 %v1082
        %1120 = vmatprep.subr.bf16.mxu0 0
        %1121 = vmatpush2.bf16.msra.mxu0 %v1081
        %1122 = vmatprep.subr.bf16.mxu0 0
        %1123 = vmatpush2.bf16.msra.mxu0 %v1080
        %1124 = vmatprep.subr.bf16.mxu0 0
        %1125 = vmatpush2.bf16.msra.mxu0 %v1079
        %1126 = vmatprep.subr.bf16.mxu0 0
        %1127 = vmatpush2.bf16.msra.mxu0 %v1078
        %1128 = vmatprep.subr.bf16.mxu0 0
        %1129 = vmatpush2.bf16.msra.mxu0 %v1077
        %1130 = vmatprep.subr.bf16.mxu0 0
        %1131 = vmatpush2.bf16.msra.mxu0 %v1076
        %1132 = vmatprep.mubr.bf16.mxu0 %v589
        %1133 = vmatmul.mubr.bf16.gmra.mxu0 %v588
        %v1134 = vpop.f32.mrf.mxu0
        %v1135 = vadd.f32 0.0, %v1134
        %v1136 = vpop.f32.mrf.mxu0
        %v1137 = vpop.f32.mrf.mxu0
        %v1138 = vpop.f32.mrf.mxu0
        %1139 = vdwg.mxu0
        %v1172 = vunpack.c.l.b16 %v940
        %v1173 = vunpack.c.l.b16 %v941
        %v1174 = vunpack.c.l.b16 %v942
        %v1175 = vunpack.c.l.b16 %v943
        %v1176 = vunpack.c.l.b16 %v944
        %v1177 = vunpack.c.l.b16 %v945
        %v1178 = vunpack.c.l.b16 %v946
        %v1179 = vunpack.c.l.b16 %v947
        %v1180 = vunpack.c.l.b16 %v948
        %v1181 = vunpack.c.l.b16 %v949
        %v1182 = vunpack.c.l.b16 %v950
        %v1183 = vunpack.c.l.b16 %v951
        %v1184 = vunpack.c.l.b16 %v952
        %v1185 = vunpack.c.l.b16 %v953
        %v1186 = vunpack.c.l.b16 %v954
        %v1187 = vunpack.c.l.b16 %v955
        %v1188 = vunpack.c.l.b16 %v956
        %v1189 = vunpack.c.l.b16 %v957
        %v1190 = vunpack.c.l.b16 %v958
        %v1191 = vunpack.c.l.b16 %v959
        %v1192 = vunpack.c.l.b16 %v960
        %v1193 = vunpack.c.l.b16 %v961
        %v1194 = vunpack.c.l.b16 %v962
        %v1195 = vunpack.c.l.b16 %v963
        %v1196 = vunpack.c.l.b16 %v964
        %v1197 = vunpack.c.l.b16 %v965
        %v1198 = vunpack.c.l.b16 %v966
        %v1199 = vunpack.c.l.b16 %v967
        %v1200 = vunpack.c.l.b16 %v968
        %v1201 = vunpack.c.l.b16 %v969
        %v1202 = vunpack.c.l.b16 %v970
        %v1203 = vunpack.c.l.b16 %v971
        %v1204 = vpack.c.b16 %v1173, %v1172
        %v1205 = vpack.c.b16 %v1175, %v1174
        %v1206 = vpack.c.b16 %v1177, %v1176
        %v1207 = vpack.c.b16 %v1179, %v1178
        %v1208 = vpack.c.b16 %v1181, %v1180
        %v1209 = vpack.c.b16 %v1183, %v1182
        %v1210 = vpack.c.b16 %v1185, %v1184
        %v1211 = vpack.c.b16 %v1187, %v1186
        %v1212 = vpack.c.b16 %v1189, %v1188
        %v1213 = vpack.c.b16 %v1191, %v1190
        %v1214 = vpack.c.b16 %v1193, %v1192
        %v1215 = vpack.c.b16 %v1195, %v1194
        %v1216 = vpack.c.b16 %v1197, %v1196
        %v1217 = vpack.c.b16 %v1199, %v1198
        %v1218 = vpack.c.b16 %v1201, %v1200
        %v1219 = vpack.c.b16 %v1203, %v1202
        %1236 = vmatprep.subr.bf16.mxu0 0
        %1237 = vmatpush1.bf16.msra.mxu0 %v1211
        %1238 = vmatprep.subr.bf16.mxu0 0
        %1239 = vmatpush1.bf16.msra.mxu0 %v1210
        %1240 = vmatprep.subr.bf16.mxu0 0
        %1241 = vmatpush1.bf16.msra.mxu0 %v1209
        %1242 = vmatprep.subr.bf16.mxu0 0
        %1243 = vmatpush1.bf16.msra.mxu0 %v1208
        %1244 = vmatprep.subr.bf16.mxu0 0
        %1245 = vmatpush1.bf16.msra.mxu0 %v1207
        %1246 = vmatprep.subr.bf16.mxu0 0
        %1247 = vmatpush1.bf16.msra.mxu0 %v1206
        %1248 = vmatprep.subr.bf16.mxu0 0
        %1249 = vmatpush1.bf16.msra.mxu0 %v1205
        %1250 = vmatprep.subr.bf16.mxu0 0
        %1251 = vmatpush1.bf16.msra.mxu0 %v1204
        %1252 = vmatprep.subr.bf16.mxu0 0
        %1253 = vmatpush2.bf16.msra.mxu0 %v1219
        %1254 = vmatprep.subr.bf16.mxu0 0
        %1255 = vmatpush2.bf16.msra.mxu0 %v1218
        %1256 = vmatprep.subr.bf16.mxu0 0
        %1257 = vmatpush2.bf16.msra.mxu0 %v1217
        %1258 = vmatprep.subr.bf16.mxu0 0
        %1259 = vmatpush2.bf16.msra.mxu0 %v1216
        %1260 = vmatprep.subr.bf16.mxu0 0
        %1261 = vmatpush2.bf16.msra.mxu0 %v1215
        %1262 = vmatprep.subr.bf16.mxu0 0
        %1263 = vmatpush2.bf16.msra.mxu0 %v1214
        %1264 = vmatprep.subr.bf16.mxu0 0
        %1265 = vmatpush2.bf16.msra.mxu0 %v1213
        %1266 = vmatprep.subr.bf16.mxu0 0
        %1267 = vmatpush2.bf16.msra.mxu0 %v1212
        %1268 = vmatprep.mubr.bf16.mxu0 %v585
        %1269 = vmatmul.mubr.bf16.gmra.mxu0 %v584
        %v1270 = vpop.f32.mrf.mxu0
        %v1271 = vadd.f32 %v1135, %v1270
        %v1272 = vpop.f32.mrf.mxu0
        %v1273 = vpop.f32.mrf.mxu0
        %v1274 = vpop.f32.mrf.mxu0
        %1275 = vdwg.mxu0
        %v1276 = vld [vmem:[%s580] sm:$0x1]
        %v1278 = vlaneseq
        %v1279 = vshrl.u32 %v1278, 7
        %v1280 = vsub.s32 0, %v1279
        %v1281 = vrot.slane %v1276, %v1280
        %v1283 = vadd.f32 %v1271, %v1281
        %v1284 = vxor.u32 %v1283, 2147483648
        %v1285 = vmul.f32 %v1284, 1.442695
        %v1286 = vpow.pop %v1285
        %v1287 = vadd.f32 %v1286, 1.0
        %v1288 = vrcp.pop %v1287
        %v1289 = vmul.f32 1.0, %v1288
        %1290 = vst [vmem:[%s567] sm:$0xff] %v939
        %v1291 = vld [vmem:[%s471] sm:$0xff]
        %v1292 = vmul.f32 %v1289, %v1291
        %1293 = vst [vmem:[%s574] sm:$0xff] %v1292
        %s1294 = sand.u32 %s262, 1
        %s1295 = scalar_lea.sflag [#allocation4], %s1294
        %s1296 = sand.u32 %s262, 1
        %s1297 = smul.addr %s1296, 8
        %s1298 = scalar_lea.vmem [#allocation12], %s1297
        %s1299 = sand.u32 %s288, 1
        %s1300 = scalar_lea.sflag [#allocation14], %s1299
        %s1301 = sand.u32 %s288, 1
        %s1302 = smul.addr %s1301, 8
        %s1303 = scalar_lea.vmem [#allocation13], %s1302
        // Predicated region
        $region85: #{tpu_custom_call.1} parent=55 // pred_check
          %p1304 = pneg %p272
        $region86: #{tpu_custom_call.1} parent=55 // pred_check_branch
          %1306 = sbr.rel (%p1304) target = $region88
        $region87: #{tpu_custom_call.1} parent=55 // pred_region
          %s1308 = ssub.s32 128, 128
          %1309 = vsyncadd %s1295, %s1308
          %s1310 = smul.addr %s30, 128
          %s1311 = scalar_lea.hbm %s9, %s1310
          %s1313 = sshll.u32 %s1298, 4
          %s1314 = int_to_ptr.vmem [resolvable:$true] %s1313
          %1316 = dma.vmem_to_hbm [thread:$0]  %s1314, 128, %s1311, %s1295
        $region88: #{tpu_custom_call.1} parent=55 // pred_fallthru
          _
        // Predicated region
        $region89: #{tpu_custom_call.1} parent=55 // pred_check
          %p1317 = pneg %p298
        $region90: #{tpu_custom_call.1} parent=55 // pred_check_branch
          %1319 = sbr.rel (%p1317) target = $region92
        $region91: #{tpu_custom_call.1} parent=55 // pred_region
          %s1321 = ssub.s32 128, 128
          %1322 = vsyncadd %s1300, %s1321
          %s1323 = smul.addr %s30, 128
          %s1324 = scalar_lea.hbm %s10, %s1323
          %s1326 = sshll.u32 %s1303, 4
          %s1327 = int_to_ptr.vmem [resolvable:$true] %s1326
          %1329 = dma.vmem_to_hbm [thread:$0]  %s1327, 128, %s1324, %s1300
        $region92: #{tpu_custom_call.1} parent=55 // pred_fallthru
          _
      $region56: #{tpu_custom_call.1} parent=5 // pred_fallthru
        _
      %p1330 = scmp.le.s32.totalorder 2, %s25
      // Predicated region
      $region93: #{tpu_custom_call.1} parent=5 // pred_check
        %p1331 = pneg %p1330
      $region94: #{tpu_custom_call.1} parent=5 // pred_check_branch
        %1333 = sbr.rel (%p1331) target = $region96
      $region95: #{tpu_custom_call.1} parent=5 // pred_region
        %s1334 = ssub.s32 %s25, 2
        // Predicated region
        $region97: #{tpu_custom_call.1} parent=95 // pred_check
          %p1335 = pneg %p278
        $region98: #{tpu_custom_call.1} parent=95 // pred_check_branch
          %1337 = sbr.rel (%p1335) target = $region100
        $region99: #{tpu_custom_call.1} parent=95 // pred_region
          %s1338 = sand.u32 %s263, 1
          %s1339 = scalar_lea.sflag [#allocation4], %s1338
          %s1340 = sand.u32 %s263, 1
          %s1341 = smul.addr %s1340, 8
          %s1342 = scalar_lea.vmem [#allocation12], %s1341
          %1343 = dma.done %s1339, 128
        $region100: #{tpu_custom_call.1} parent=95 // pred_fallthru
          _
        // Predicated region
        $region101: #{tpu_custom_call.1} parent=95 // pred_check
          %p1344 = pneg %p304
        $region102: #{tpu_custom_call.1} parent=95 // pred_check_branch
          %1346 = sbr.rel (%p1344) target = $region104
        $region103: #{tpu_custom_call.1} parent=95 // pred_region
          %s1347 = sand.u32 %s289, 1
          %s1348 = scalar_lea.sflag [#allocation14], %s1347
          %s1349 = sand.u32 %s289, 1
          %s1350 = smul.addr %s1349, 8
          %s1351 = scalar_lea.vmem [#allocation13], %s1350
          %1352 = dma.done %s1348, 128
        $region104: #{tpu_custom_call.1} parent=95 // pred_fallthru
          _
      $region96: #{tpu_custom_call.1} parent=5 // pred_fallthru
        _
    $region6: #{tpu_custom_call.1} parent=1 // loop_footer
      %s29 = sadd.s32 1, %s25
    $region7: #{tpu_custom_call.1} parent=1 // loop_footer_branch
      %24 = sbr.rel target = $region3
    $region8: #{tpu_custom_call.1} parent=1 // loop_exit
      _
    %1353 = vsyncpa [#allocation3], 1
    %s1354 = scalar_lea.sflag [#allocation3], 1
    %1355 = vsyncpa %s1354, 1
    %1356 = vsyncpa [#allocation6], 1
    %1357 = vsyncpa [#allocation4], 1
    %s1358 = scalar_lea.sflag [#allocation4], 1
    %1359 = vsyncpa %s1358, 1
    %1360 = vsyncpa [#allocation14], 1
    %s1361 = scalar_lea.sflag [#allocation14], 1
    %1362 = vsyncpa %s1361, 1

</llo_original>
